<compile_context>
chip_gen: v5e
topology: v5e:2x2
jax: 0.10.0
libtpu: 0.0.40
codegen_flags: <defaults>
</compile_context>

<pallas_src>
import jax
import jax.numpy as jnp
from jax.experimental import pallas as pl
from jax.experimental.pallas import tpu as pltpu

_ROW_TILE = 256  # row tile of the N x N graph (fills the 256x256 MXUs of v6e/v7x)


# ----------------------------------------------------------------------------
# Kernel: one grid step == one (batch, row-tile) strip of the fused graph diff.
#   a_ref   : (ROW_TILE, 2C)  rows of [Xs, Xt]        (pre-normalized, f32)
#   b_ref   : (N_pad, 2C)     full   [Xs, -Xt]        (batch-resident in VMEM)
#   out_ref : (1, N_pad)      f32 lane-dense partial sum of (cos_s - cos_t)^2
# ----------------------------------------------------------------------------
def _graph_mse_kernel(a_ref, b_ref, out_ref):
    # d[i, j] = <a_i, b_j> = cos_s[i, j] - cos_t[i, j]   (single MXU matmul, f32 acc)
    dn = (((1,), (1,)), ((), ()))
    d = jax.lax.dot_general(a_ref[...], b_ref[...], dn,
                            preferred_element_type=jnp.float32)
    # Sublane-axis reduce -> (1, N_pad) lane-dense block, written once per step.
    out_ref[...] = jnp.sum(d * d, axis=0, keepdims=True)


# ----------------------------------------------------------------------------
# Wrapper: single fused prep pass (reshape + transpose + normalize + signed concat
# + zero pad), one pallas_call, then the final mean.
# ----------------------------------------------------------------------------
def _graph_mse(x_s, x_t, *, row_tile=_ROW_TILE):
    """MSE between the cosine-similarity graphs of x_s and x_t (both NCHW)."""
    B, C, Wd, Hd = x_s.shape
    N = Wd * Hd
    n_row = pl.cdiv(N, row_tile)
    N_pad = n_row * row_tile
    C2 = 2 * C

    def unit_pixels(x):
        # (B, C, W, H) -> (B, N, C) with unit-L2 rows; zero rows stay zero so padded
        # pixels contribute exactly 0 to the loss.
        x = x.reshape(B, C, N).astype(jnp.float32)
        x = jnp.transpose(x, (0, 2, 1))                          # (B, N, C)
        nsq = jnp.sum(x * x, axis=-1, keepdims=True)             # (B, N, 1)
        inv = jnp.where(nsq > 0.0, jax.lax.rsqrt(nsq), 0.0)      # EUP rsqrt, guarded
        return x * inv

    xs = unit_pixels(x_s)
    xt = unit_pixels(x_t)
    a = jnp.concatenate([xs, xt], axis=-1)                       # (B, N, 2C)
    bm = jnp.concatenate([xs, -xt], axis=-1)                     # (B, N, 2C)
    if N_pad != N:
        pad = ((0, 0), (0, N_pad - N), (0, 0))
        a = jnp.pad(a, pad)
        bm = jnp.pad(bm, pad)

    row_spec = pl.BlockSpec((pl.Squeezed(), row_tile, C2), lambda b, i: (b, i, 0))
    # Column operand: index_map depends only on b -> resident across the row loop.
    col_spec = pl.BlockSpec((pl.Squeezed(), N_pad, C2), lambda b, i: (b, 0, 0))
    out_spec = pl.BlockSpec((pl.Squeezed(), pl.Squeezed(), 1, N_pad),
                            lambda b, i: (b, i, 0, 0))

    flops = 2 * B * N_pad * N_pad * C2 + 2 * B * N_pad * N_pad
    bytes_accessed = (2 * B * N_pad * C2 * 4          # a + bm
                      + B * n_row * N_pad * 4)        # output slabs

    out = pl.pallas_call(
        _graph_mse_kernel,
        out_shape=jax.ShapeDtypeStruct((B, n_row, 1, N_pad), jnp.float32),
        grid=(B, n_row),
        in_specs=[row_spec, col_spec],
        out_specs=out_spec,
        compiler_params=pltpu.CompilerParams(
            dimension_semantics=("parallel", "parallel")),
        cost_estimate=pl.CostEstimate(flops=flops, transcendentals=0,
                                      bytes_accessed=bytes_accessed),
    )(a, bm)

    # MSE: mean over the true (un-padded) B * N * N graph elements.
    return jnp.sum(out) / jnp.float32(B * N * N)


def criterion_sdcos_no(preds, soft):
    """Forward of CriterionSDcos_no: MSE between cosine graphs of preds[1] / soft[1]."""
    # TODO(synk): forward-only; no custom VJP is defined for training with jax.grad.
    return _graph_mse(preds[1], soft[1])


# ----------------------------------------------------------------------------
# Pure-JAX reference (mirrors the PyTorch math: energy / (|q_i| |q_j|), then MSE).
# ----------------------------------------------------------------------------
def _reference(preds, soft):
    def graph(x):
        B, C, Wd, Hd = x.shape
        N = Wd * Hd
        pk = x.reshape(B, C, N).astype(jnp.float32)              # (B, C, N)
        pq = jnp.transpose(pk, (0, 2, 1))                        # (B, N, C)
        qn = jnp.sqrt(jnp.sum(pq * pq, axis=2))                  # (B, N)
        nm = qn[:, :, None] * qn[:, None, :]                     # (B, N, N)
        energy = jnp.einsum('bnc,bcm->bnm', pq, pk)              # (B, N, N)
        return energy / nm

    gs = graph(preds[1])
    gt = graph(soft[1])
    return jnp.mean((gs - gt) ** 2)


if __name__ == "__main__":
    key = jax.random.PRNGKey(0)
    k0, k1, k2, k3 = jax.random.split(key, 4)

    # Small shapes consistent with the module: B=2, C=4, W=H=16 -> N=256 (one row tile).
    B, C, Wd, Hd = 2, 4, 16, 16
    preds = [jax.random.normal(k0, (B, C, Wd, Hd), dtype=jnp.float32),
             jax.random.normal(k1, (B, C, Wd, Hd), dtype=jnp.float32)]
    soft = [jax.random.normal(k2, (B, C, Wd, Hd), dtype=jnp.float32),
            jax.random.normal(k3, (B, C, Wd, Hd), dtype=jnp.float32)]

    loss = jax.block_until_ready(criterion_sdcos_no(preds, soft))
    ref = jax.block_until_ready(_reference(preds, soft))

    assert jnp.isfinite(loss), "non-finite loss"
    assert jnp.allclose(loss, ref, rtol=1e-3, atol=1e-5), (loss, ref)
    print("KERNEL_OK")
</pallas_src>

<mosaic_0001>
module attributes {stable_mosaic.version = 11 : i64} {
  func.func @_graph_mse_kernel(%arg0: i32, %arg1: i32, %arg2: memref<1x256x8xf32, #tpu.memory_space<vmem>>, %arg3: memref<1x256x8xf32, #tpu.memory_space<vmem>>, %arg4: memref<1x1x1x256xf32, #tpu.memory_space<vmem>>) attributes {dimension_semantics = [#tpu.dimension_semantics<parallel>, #tpu.dimension_semantics<parallel>], iteration_bounds = array<i64: 2, 1>, scalar_prefetch = 0 : i64, scratch_operands = 0 : i64, tpu.core_type = #tpu.core_type<tc>, window_params = [{transform_indices = @transform_0, window_bounds = array<i64: 1, 256, 8>}, {transform_indices = @transform_1, window_bounds = array<i64: 1, 256, 8>}, {transform_indices = @transform_2, window_bounds = array<i64: 1, 1, 1, 256>}]} {
    %c0 = arith.constant 0 : index
    %c0_0 = arith.constant 0 : index
    %c0_1 = arith.constant 0 : index
    %0 = vector.load %arg2[%c0, %c0_0, %c0_1] : memref<1x256x8xf32, #tpu.memory_space<vmem>>, vector<1x256x8xf32>
    %1 = vector.shape_cast %0 : vector<1x256x8xf32> to vector<256x8xf32>
    %c0_2 = arith.constant 0 : index
    %c0_3 = arith.constant 0 : index
    %c0_4 = arith.constant 0 : index
    %2 = vector.load %arg3[%c0_2, %c0_3, %c0_4] : memref<1x256x8xf32, #tpu.memory_space<vmem>>, vector<1x256x8xf32>
    %3 = vector.shape_cast %2 : vector<1x256x8xf32> to vector<256x8xf32>
    %cst = arith.constant dense<0.000000e+00> : vector<256x256xf32>
    %4 = tpu.matmul %1, %3, %cst {dimension_numbers = #tpu.dot_dimension_numbers<[1], [1], [0], [0], [0, 0, 1, 0], [], []>} : vector<256x8xf32>, vector<256x8xf32>, vector<256x256xf32> -> vector<256x256xf32>
    %5 = arith.mulf %4, %4 : vector<256x256xf32>
    %cst_5 = arith.constant dense<0.000000e+00> : vector<256xf32>
    %6 = vector.multi_reduction <add>, %5, %cst_5 [0] : vector<256x256xf32> to vector<256xf32>
    %7 = vector.shape_cast %6 : vector<256xf32> to vector<1x256xf32>
    %c0_6 = arith.constant 0 : index
    %c0_7 = arith.constant 0 : index
    %c0_8 = arith.constant 0 : index
    %c0_9 = arith.constant 0 : index
    %8 = vector.load %arg4[%c0_6, %c0_7, %c0_8, %c0_9] : memref<1x1x1x256xf32, #tpu.memory_space<vmem>>, vector<1x1x1x256xf32>
    %9 = vector.shape_cast %8 : vector<1x1x1x256xf32> to vector<1x256xf32>
    %10 = vector.shape_cast %7 : vector<1x256xf32> to vector<1x1x1x256xf32>
    tpu.vector_store %arg4[%c0_6, %c0_7, %c0_8, %c0_9], %10 {strides = array<i32>} : memref<1x1x1x256xf32, #tpu.memory_space<vmem>>, vector<1x1x1x256xf32>,
    return
  }
  func.func @transform_0(%arg0: i32, %arg1: i32) -> (i32, i32, i32) {
    %c0_i32 = arith.constant 0 : i32
    %c0_i32_0 = arith.constant 0 : i32
    return %arg0, %arg1, %c0_i32 : i32, i32, i32
  }
  func.func @transform_1(%arg0: i32, %arg1: i32) -> (i32, i32, i32) {
    %c0_i32 = arith.constant 0 : i32
    %c0_i32_0 = arith.constant 0 : i32
    %c0_i32_1 = arith.constant 0 : i32
    return %arg0, %c0_i32, %c0_i32_0 : i32, i32, i32
  }
  func.func @transform_2(%arg0: i32, %arg1: i32) -> (i32, i32, i32, i32) {
    %c0_i32 = arith.constant 0 : i32
    %c0_i32_0 = arith.constant 0 : i32
    %c0_i32_1 = arith.constant 0 : i32
    return %arg0, %arg1, %c0_i32, %c0_i32_0 : i32, i32, i32, i32
  }
}

</mosaic_0001>

<llo_original>
// kernel: tpu_custom_call.1
$region0: #{tpu_custom_call.1}
  #allocation0 [shape = 'u32[]', space=smem, size = 0x4, offset = 0x4, fixed_abs, tag = 'smem constant byte address 0x4 - core index']
  #allocation1 [shape = 'u32[72,128]{1,0:T(1,128)}', space=vmem, size = 0x9000, scoped, tag = 'internal scratch']
  %s0 = inlined_call_operand.vmem [shape: f32[2,256,8], index: 0, kind: input, shape index: {}]
  %s1 = inlined_call_operand.vmem [shape: f32[2,256,8], index: 1, kind: input, shape index: {}]
  %s2 = inlined_call_operand.hbm [shape: f32[2,1,1,256], index: 2, kind: output, shape index: {}]
  %s3 = sld [smem:[#allocation0]]
  $region41: #{tpu_custom_call.1} parent=0
    _
  %s5 = ssub.s32 1, %s3
  %s6 = scalar_select 0, %s5, %s3
  $region1: #{tpu_custom_call.1} parent=0
    #allocation2 [shape = 'u8[2048]{0}', space=vmem, size = 0x800, scoped, tag = 'output window, operand 0']
    #allocation3 [shape = 's32[2]{0}', space=sflag, size = 0x8, scoped, tag = 'scoped memory for tpu_custom_call.1']
    %7 = vsyncpa [#allocation3], 0
    %s8 = scalar_lea.sflag [#allocation3], 1
    %9 = vsyncpa %s8, 0
    loop: start=0, step=1, limit=4
    $region2: #{tpu_custom_call.1} parent=1 // loop_pre_header
      _
    $region3: #{tpu_custom_call.1} parent=1 // loop_header
      %s11 = sphi 0, %s15
      %p12 = scmp.ge.s32.totalorder %s11, 4
      %s18 = sphi 0, %s30
      %s19 = sphi 0, %s26
      %s20 = sphi 0, %s18
      %s21 = sphi 0, %s19
      %s22 = sphi 0, %s20
      %s23 = sphi 0, %s21
      %s35 = sphi 0, %s37
      %s38 = sphi 0, %s35
      %s39 = sphi 0, %s38
      %s55 = sphi 0, %s39
      %s61 = sphi 0, %s63
      %s64 = sphi 0, %s61
      %s65 = sphi 0, %s64
      %s81 = sphi 0, %s65
      %s89 = sphi 0, %s91
      %s92 = sphi 0, %s89
      %s93 = sphi 0, %s92
      %s109 = sphi 0, %s93
    $region4: #{tpu_custom_call.1} parent=1 // loop_header_branch
      %14 = sbr.rel (%p12) target = $region8
    $region5: #{tpu_custom_call.1} parent=1 // loop_body
      %s16 = ssub.s32 %s11, 1
      %s17 = ssub.s32 %s11, 2
      %s24 = sadd.s32 1, %s19
      %p25 = scmp.ge.s32.totalorder %s24, 1
      %s26 = scalar_select %p25, 0, %s24
      %s27 = sadd.s32 1, %s18
      %s28 = scalar_select %p25, %s27, %s18
      %p29 = scmp.ge.s32.totalorder %s28, 2
      %s30 = scalar_select %p29, 0, %s28
      %s31 = ssub.s32 %s18, %s30
      %s32 = ssub.s32 %s19, %s26
      %s33 = sor.u32 %s31, %s32
      %p34 = scmp.eq.s32.totalorder %s33, 0
      %s36 = sadd.s32 %s35, 1
      %s37 = scalar_select %p34, %s35, %s36
      %p40 = pneg %p34
      %p41 = scmp.eq.s32.totalorder %s11, 1
      %p42 = por %p40, %p41
      %p43 = scmp.ne.s32.totalorder %s35, %s38
      %p44 = scmp.eq.s32.totalorder %s11, 0
      %p45 = por %p43, %p44
      %p46 = scmp.ne.s32.totalorder %s35, %s38
      %p47 = scmp.eq.s32.totalorder %s16, 1
      %p48 = por %p46, %p47
      %p49 = scmp.ne.s32.totalorder %s38, %s39
      %p50 = scmp.eq.s32.totalorder %s16, 0
      %p51 = por %p49, %p50
      %p52 = scmp.ne.s32.totalorder %s38, %s39
      %p53 = scmp.eq.s32.totalorder %s17, 1
      %p54 = por %p52, %p53
      %p56 = scmp.ne.s32.totalorder %s39, %s55
      %p57 = scmp.eq.s32.totalorder %s17, 0
      %p58 = por %p56, %p57
      %s59 = ssub.s32 %s18, %s30
      %p60 = scmp.eq.s32.totalorder %s59, 0
      %s62 = sadd.s32 %s61, 1
      %s63 = scalar_select %p60, %s61, %s62
      %p66 = pneg %p60
      %p67 = scmp.eq.s32.totalorder %s11, 1
      %p68 = por %p66, %p67
      %p69 = scmp.ne.s32.totalorder %s61, %s64
      %p70 = scmp.eq.s32.totalorder %s11, 0
      %p71 = por %p69, %p70
      %p72 = scmp.ne.s32.totalorder %s61, %s64
      %p73 = scmp.eq.s32.totalorder %s16, 1
      %p74 = por %p72, %p73
      %p75 = scmp.ne.s32.totalorder %s64, %s65
      %p76 = scmp.eq.s32.totalorder %s16, 0
      %p77 = por %p75, %p76
      %p78 = scmp.ne.s32.totalorder %s64, %s65
      %p79 = scmp.eq.s32.totalorder %s17, 1
      %p80 = por %p78, %p79
      %p82 = scmp.ne.s32.totalorder %s65, %s81
      %p83 = scmp.eq.s32.totalorder %s17, 0
      %p84 = por %p82, %p83
      %s85 = ssub.s32 %s18, %s30
      %s86 = ssub.s32 %s19, %s26
      %s87 = sor.u32 %s85, %s86
      %p88 = scmp.eq.s32.totalorder %s87, 0
      %s90 = sadd.s32 %s89, 1
      %s91 = scalar_select %p88, %s89, %s90
      %p94 = pneg %p88
      %p95 = scmp.eq.s32.totalorder %s11, 1
      %p96 = por %p94, %p95
      %p97 = scmp.ne.s32.totalorder %s89, %s92
      %p98 = scmp.eq.s32.totalorder %s11, 0
      %p99 = por %p97, %p98
      %p100 = scmp.ne.s32.totalorder %s89, %s92
      %p101 = scmp.eq.s32.totalorder %s16, 1
      %p102 = por %p100, %p101
      %p103 = scmp.ne.s32.totalorder %s92, %s93
      %p104 = scmp.eq.s32.totalorder %s16, 0
      %p105 = por %p103, %p104
      %p106 = scmp.ne.s32.totalorder %s92, %s93
      %p107 = scmp.eq.s32.totalorder %s17, 1
      %p108 = por %p106, %p107
      %p110 = scmp.ne.s32.totalorder %s93, %s109
      %p111 = scmp.eq.s32.totalorder %s17, 0
      %p112 = por %p110, %p111
      %p113 = scmp.le.s32.totalorder 1, %s11
      %p114 = scmp.lt.s32.totalorder %s11, 3
      %p115 = pnand %p113, %p114
      %p116 = pneg %p115
      // Predicated region
      $region9: #{tpu_custom_call.1} parent=5 // pred_check
        _
      $region10: #{tpu_custom_call.1} parent=5 // pred_check_branch
        %118 = sbr.rel (%p115) target = $region12
      $region11: #{tpu_custom_call.1} parent=5 // pred_region
        %s119 = ssub.s32 %s11, 1
      $region12: #{tpu_custom_call.1} parent=5 // pred_fallthru
        _
      %p120 = scmp.lt.s32.totalorder %s11, 2
      // Predicated region
      $region13: #{tpu_custom_call.1} parent=5 // pred_check
        %p121 = pneg %p120
      $region14: #{tpu_custom_call.1} parent=5 // pred_check_branch
        %123 = sbr.rel (%p121) target = $region16
      $region15: #{tpu_custom_call.1} parent=5 // pred_region
        // Predicated region
        $region17: #{tpu_custom_call.1} parent=15 // pred_check
          %p124 = pneg %p45
        $region18: #{tpu_custom_call.1} parent=15 // pred_check_branch
          %126 = sbr.rel (%p124) target = $region20
        $region19: #{tpu_custom_call.1} parent=15 // pred_region
          %s127 = smul.u32 32, %s19
          %p128 = scmp.lt.s32.totalorder %s18, 1
          %s129 = scalar_select %p128, %s18, 1
          %p130 = scmp.lt.s32.totalorder %s127, 31
          %s131 = scalar_select %p130, %s127, 31
          %s132 = smul.addr %s129, 32
          %s133 = sadd.s32 %s131, %s132
          %s134 = smul.addr %s133, 8
          %s135 = scalar_lea.vmem %s0, %s134
          %s136 = smul.u32 32, %s19
        $region20: #{tpu_custom_call.1} parent=15 // pred_fallthru
          _
        // Predicated region
        $region21: #{tpu_custom_call.1} parent=15 // pred_check
          %p137 = pneg %p71
        $region22: #{tpu_custom_call.1} parent=15 // pred_check_branch
          %139 = sbr.rel (%p137) target = $region24
        $region23: #{tpu_custom_call.1} parent=15 // pred_region
          %p140 = scmp.lt.s32.totalorder %s18, 1
          %s141 = scalar_select %p140, %s18, 1
          %s142 = smul.addr %s141, 32
          %s143 = smul.addr %s142, 8
          %s144 = scalar_lea.vmem %s1, %s143
        $region24: #{tpu_custom_call.1} parent=15 // pred_fallthru
          _
      $region16: #{tpu_custom_call.1} parent=5 // pred_fallthru
        _
      %p145 = scmp.le.s32.totalorder 1, %s11
      %p146 = scmp.lt.s32.totalorder %s11, 3
      %p147 = pnand %p145, %p146
      %p148 = pneg %p147
      // Predicated region
      $region25: #{tpu_custom_call.1} parent=5 // pred_check
        _
      $region26: #{tpu_custom_call.1} parent=5 // pred_check_branch
        %150 = sbr.rel (%p147) target = $region28
      $region27: #{tpu_custom_call.1} parent=5 // pred_region
        %s151 = ssub.s32 %s11, 1
        %s152 = smul.u32 32, %s21
        %p153 = scmp.lt.s32.totalorder %s20, 1
        %s154 = scalar_select %p153, %s20, 1
        %p155 = scmp.lt.s32.totalorder %s152, 31
        %s156 = scalar_select %p155, %s152, 31
        %s157 = smul.addr %s154, 32
        %s158 = sadd.s32 %s156, %s157
        %s159 = smul.addr %s158, 8
        %s160 = scalar_lea.vmem %s0, %s159
        %p161 = pneg %p51
        %p162 = pneg %p48
        %p163 = scmp.lt.s32.totalorder %s20, 1
        %s164 = scalar_select %p163, %s20, 1
        %s165 = smul.addr %s164, 32
        %s166 = smul.addr %s165, 8
        %s167 = scalar_lea.vmem %s1, %s166
        %p168 = pneg %p77
        %p169 = pneg %p74
        %p170 = pneg %p105
        %p171 = pneg %p102
        %s172 = sand.u32 %s92, 1
        %s173 = scalar_lea.sflag [#allocation3], %s172
        %s174 = sand.u32 %s92, 1
        %s175 = smul.addr %s174, 2
        %s176 = scalar_lea.vmem [#allocation2], %s175
        %s177 = smul.u32 32, %s21
        %p178 = scmp.lt.s32.totalorder %s20, 1
        %s179 = scalar_select %p178, %s20, 1
        %p180 = scmp.lt.s32.totalorder %s177, 31
        %s181 = scalar_select %p180, %s177, 31
        %s182 = smul.addr %s179, 32
        %s183 = sadd.s32 %s181, %s182
        %s184 = smul.addr %s183, 8
        %s185 = scalar_lea.vmem %s0, %s184
        %s186 = smul.u32 32, %s21
        %p187 = scmp.lt.s32.totalorder %s20, 1
        %s188 = scalar_select %p187, %s20, 1
        %s189 = smul.addr %s188, 32
        %s190 = smul.addr %s189, 8
        %s191 = scalar_lea.vmem %s1, %s190
        %v192 = vld [vmem:[%s185] sm:$0xff]
        %v193 = vld [vmem:[%s185 + $0x8] sm:$0xff]
        %v194 = vld [vmem:[%s185 + $0x10] sm:$0xff]
        %v195 = vld [vmem:[%s185 + $0x18] sm:$0xff]
        %v196 = vld [vmem:[%s185 + $0x20] sm:$0xff]
        %v197 = vld [vmem:[%s185 + $0x28] sm:$0xff]
        %v198 = vld [vmem:[%s185 + $0x30] sm:$0xff]
        %v199 = vld [vmem:[%s185 + $0x38] sm:$0xff]
        %v200 = vld [vmem:[%s185 + $0x40] sm:$0xff]
        %v201 = vld [vmem:[%s185 + $0x48] sm:$0xff]
        %v202 = vld [vmem:[%s185 + $0x50] sm:$0xff]
        %v203 = vld [vmem:[%s185 + $0x58] sm:$0xff]
        %v204 = vld [vmem:[%s185 + $0x60] sm:$0xff]
        %v205 = vld [vmem:[%s185 + $0x68] sm:$0xff]
        %v206 = vld [vmem:[%s185 + $0x70] sm:$0xff]
        %v207 = vld [vmem:[%s185 + $0x78] sm:$0xff]
        %v208 = vld [vmem:[%s185 + $0x80] sm:$0xff]
        %v209 = vld [vmem:[%s185 + $0x88] sm:$0xff]
        %v210 = vld [vmem:[%s185 + $0x90] sm:$0xff]
        %v211 = vld [vmem:[%s185 + $0x98] sm:$0xff]
        %v212 = vld [vmem:[%s185 + $0xa0] sm:$0xff]
        %v213 = vld [vmem:[%s185 + $0xa8] sm:$0xff]
        %v214 = vld [vmem:[%s185 + $0xb0] sm:$0xff]
        %v215 = vld [vmem:[%s185 + $0xb8] sm:$0xff]
        %v216 = vld [vmem:[%s185 + $0xc0] sm:$0xff]
        %v217 = vld [vmem:[%s185 + $0xc8] sm:$0xff]
        %v218 = vld [vmem:[%s185 + $0xd0] sm:$0xff]
        %v219 = vld [vmem:[%s185 + $0xd8] sm:$0xff]
        %v220 = vld [vmem:[%s185 + $0xe0] sm:$0xff]
        %v221 = vld [vmem:[%s185 + $0xe8] sm:$0xff]
        %v222 = vld [vmem:[%s185 + $0xf0] sm:$0xff]
        %v223 = vld [vmem:[%s185 + $0xf8] sm:$0xff]
        %v224 = vld [vmem:[%s191] sm:$0xff]
        %v225 = vld [vmem:[%s191 + $0x8] sm:$0xff]
        %v226 = vld [vmem:[%s191 + $0x10] sm:$0xff]
        %v227 = vld [vmem:[%s191 + $0x18] sm:$0xff]
        %v228 = vld [vmem:[%s191 + $0x20] sm:$0xff]
        %v229 = vld [vmem:[%s191 + $0x28] sm:$0xff]
        %v230 = vld [vmem:[%s191 + $0x30] sm:$0xff]
        %v231 = vld [vmem:[%s191 + $0x38] sm:$0xff]
        %v232 = vld [vmem:[%s191 + $0x40] sm:$0xff]
        %v233 = vld [vmem:[%s191 + $0x48] sm:$0xff]
        %v234 = vld [vmem:[%s191 + $0x50] sm:$0xff]
        %v235 = vld [vmem:[%s191 + $0x58] sm:$0xff]
        %v236 = vld [vmem:[%s191 + $0x60] sm:$0xff]
        %v237 = vld [vmem:[%s191 + $0x68] sm:$0xff]
        %v238 = vld [vmem:[%s191 + $0x70] sm:$0xff]
        %v239 = vld [vmem:[%s191 + $0x78] sm:$0xff]
        %v240 = vld [vmem:[%s191 + $0x80] sm:$0xff]
        %v241 = vld [vmem:[%s191 + $0x88] sm:$0xff]
        %v242 = vld [vmem:[%s191 + $0x90] sm:$0xff]
        %v243 = vld [vmem:[%s191 + $0x98] sm:$0xff]
        %v244 = vld [vmem:[%s191 + $0xa0] sm:$0xff]
        %v245 = vld [vmem:[%s191 + $0xa8] sm:$0xff]
        %v246 = vld [vmem:[%s191 + $0xb0] sm:$0xff]
        %v247 = vld [vmem:[%s191 + $0xb8] sm:$0xff]
        %v248 = vld [vmem:[%s191 + $0xc0] sm:$0xff]
        %v249 = vld [vmem:[%s191 + $0xc8] sm:$0xff]
        %v250 = vld [vmem:[%s191 + $0xd0] sm:$0xff]
        %v251 = vld [vmem:[%s191 + $0xd8] sm:$0xff]
        %v252 = vld [vmem:[%s191 + $0xe0] sm:$0xff]
        %v253 = vld [vmem:[%s191 + $0xe8] sm:$0xff]
        %v254 = vld [vmem:[%s191 + $0xf0] sm:$0xff]
        %v255 = vld [vmem:[%s191 + $0xf8] sm:$0xff]
        %vm256 = vcmask 64512
        %v258 = vsel %vm256, %v192, 0
        %v261 = vsel %vm256, %v193, 0
        %v264 = vsel %vm256, %v194, 0
        %v267 = vsel %vm256, %v195, 0
        %v270 = vsel %vm256, %v196, 0
        %v273 = vsel %vm256, %v197, 0
        %v276 = vsel %vm256, %v198, 0
        %v279 = vsel %vm256, %v199, 0
        %v282 = vsel %vm256, %v200, 0
        %v285 = vsel %vm256, %v201, 0
        %v288 = vsel %vm256, %v202, 0
        %v291 = vsel %vm256, %v203, 0
        %v294 = vsel %vm256, %v204, 0
        %v297 = vsel %vm256, %v205, 0
        %v300 = vsel %vm256, %v206, 0
        %v303 = vsel %vm256, %v207, 0
        %v306 = vsel %vm256, %v208, 0
        %v309 = vsel %vm256, %v209, 0
        %v312 = vsel %vm256, %v210, 0
        %v315 = vsel %vm256, %v211, 0
        %v318 = vsel %vm256, %v212, 0
        %v321 = vsel %vm256, %v213, 0
        %v324 = vsel %vm256, %v214, 0
        %v327 = vsel %vm256, %v215, 0
        %v330 = vsel %vm256, %v216, 0
        %v333 = vsel %vm256, %v217, 0
        %v336 = vsel %vm256, %v218, 0
        %v339 = vsel %vm256, %v219, 0
        %v342 = vsel %vm256, %v220, 0
        %v345 = vsel %vm256, %v221, 0
        %v348 = vsel %vm256, %v222, 0
        %v351 = vsel %vm256, %v223, 0
        %v354 = vsel %vm256, %v224, 0
        %v357 = vsel %vm256, %v225, 0
        %v360 = vsel %vm256, %v226, 0
        %v363 = vsel %vm256, %v227, 0
        %v366 = vsel %vm256, %v228, 0
        %v369 = vsel %vm256, %v229, 0
        %v372 = vsel %vm256, %v230, 0
        %v375 = vsel %vm256, %v231, 0
        %v378 = vsel %vm256, %v232, 0
        %v381 = vsel %vm256, %v233, 0
        %v384 = vsel %vm256, %v234, 0
        %v387 = vsel %vm256, %v235, 0
        %v390 = vsel %vm256, %v236, 0
        %v393 = vsel %vm256, %v237, 0
        %v396 = vsel %vm256, %v238, 0
        %v399 = vsel %vm256, %v239, 0
        %v402 = vsel %vm256, %v240, 0
        %v405 = vsel %vm256, %v241, 0
        %v408 = vsel %vm256, %v242, 0
        %v411 = vsel %vm256, %v243, 0
        %v414 = vsel %vm256, %v244, 0
        %v417 = vsel %vm256, %v245, 0
        %v420 = vsel %vm256, %v246, 0
        %v423 = vsel %vm256, %v247, 0
        %v426 = vsel %vm256, %v248, 0
        %v429 = vsel %vm256, %v249, 0
        %v432 = vsel %vm256, %v250, 0
        %v435 = vsel %vm256, %v251, 0
        %v438 = vsel %vm256, %v252, 0
        %v441 = vsel %vm256, %v253, 0
        %v444 = vsel %vm256, %v254, 0
        %v447 = vsel %vm256, %v255, 0
        %449 = vmatpush.xpose.msra.mxu0 %v399
        %450 = vmatpush.xpose.msra.mxu0 %v396
        %451 = vmatpush.xpose.msra.mxu0 %v393
        %452 = vmatpush.xpose.msra.mxu0 %v390
        %453 = vmatpush.xpose.msra.mxu0 %v387
        %454 = vmatpush.xpose.msra.mxu0 %v384
        %455 = vmatpush.xpose.msra.mxu0 %v381
        %456 = vmatpush.xpose.msra.mxu0 %v378
        %457 = vmatpush.xpose.msra.mxu0 %v375
        %458 = vmatpush.xpose.msra.mxu0 %v372
        %459 = vmatpush.xpose.msra.mxu0 %v369
        %460 = vmatpush.xpose.msra.mxu0 %v366
        %461 = vmatpush.xpose.msra.mxu0 %v363
        %462 = vmatpush.xpose.msra.mxu0 %v360
        %463 = vmatpush.xpose.msra.mxu0 %v357
        %464 = vmatpush.xpose.msra.mxu0 %v354
        %465 = vmatmul.f32.gmra.mxu0 %v258
        %v466 = vpop.f32.mrf.mxu0
        %v467 = vadd.f32 0.0, %v466
        %468 = vmatmul.f32.gmra.mxu0 %v261
        %v469 = vpop.f32.mrf.mxu0
        %v470 = vadd.f32 0.0, %v469
        %471 = vmatmul.f32.gmra.mxu0 %v264
        %v472 = vpop.f32.mrf.mxu0
        %v473 = vadd.f32 0.0, %v472
        %474 = vmatmul.f32.gmra.mxu0 %v267
        %v475 = vpop.f32.mrf.mxu0
        %v476 = vadd.f32 0.0, %v475
        %477 = vmatmul.f32.gmra.mxu0 %v270
        %v478 = vpop.f32.mrf.mxu0
        %v479 = vadd.f32 0.0, %v478
        %480 = vmatmul.f32.gmra.mxu0 %v273
        %v481 = vpop.f32.mrf.mxu0
        %v482 = vadd.f32 0.0, %v481
        %483 = vmatmul.f32.gmra.mxu0 %v276
        %v484 = vpop.f32.mrf.mxu0
        %v485 = vadd.f32 0.0, %v484
        %486 = vmatmul.f32.gmra.mxu0 %v279
        %v487 = vpop.f32.mrf.mxu0
        %v488 = vadd.f32 0.0, %v487
        %489 = vmatmul.f32.gmra.mxu0 %v282
        %v490 = vpop.f32.mrf.mxu0
        %v491 = vadd.f32 0.0, %v490
        %492 = vmatmul.f32.gmra.mxu0 %v285
        %v493 = vpop.f32.mrf.mxu0
        %v494 = vadd.f32 0.0, %v493
        %495 = vmatmul.f32.gmra.mxu0 %v288
        %v496 = vpop.f32.mrf.mxu0
        %v497 = vadd.f32 0.0, %v496
        %498 = vmatmul.f32.gmra.mxu0 %v291
        %v499 = vpop.f32.mrf.mxu0
        %v500 = vadd.f32 0.0, %v499
        %501 = vmatmul.f32.gmra.mxu0 %v294
        %v502 = vpop.f32.mrf.mxu0
        %v503 = vadd.f32 0.0, %v502
        %504 = vmatmul.f32.gmra.mxu0 %v297
        %v505 = vpop.f32.mrf.mxu0
        %v506 = vadd.f32 0.0, %v505
        %507 = vmatmul.f32.gmra.mxu0 %v300
        %v508 = vpop.f32.mrf.mxu0
        %v509 = vadd.f32 0.0, %v508
        %510 = vmatmul.f32.gmra.mxu0 %v303
        %v511 = vpop.f32.mrf.mxu0
        %v512 = vadd.f32 0.0, %v511
        %513 = vmatmul.f32.gmra.mxu0 %v306
        %v514 = vpop.f32.mrf.mxu0
        %v515 = vadd.f32 0.0, %v514
        %516 = vmatmul.f32.gmra.mxu0 %v309
        %v517 = vpop.f32.mrf.mxu0
        %v518 = vadd.f32 0.0, %v517
        %519 = vmatmul.f32.gmra.mxu0 %v312
        %v520 = vpop.f32.mrf.mxu0
        %v521 = vadd.f32 0.0, %v520
        %522 = vmatmul.f32.gmra.mxu0 %v315
        %v523 = vpop.f32.mrf.mxu0
        %v524 = vadd.f32 0.0, %v523
        %525 = vmatmul.f32.gmra.mxu0 %v318
        %v526 = vpop.f32.mrf.mxu0
        %v527 = vadd.f32 0.0, %v526
        %528 = vmatmul.f32.gmra.mxu0 %v321
        %v529 = vpop.f32.mrf.mxu0
        %v530 = vadd.f32 0.0, %v529
        %531 = vmatmul.f32.gmra.mxu0 %v324
        %v532 = vpop.f32.mrf.mxu0
        %v533 = vadd.f32 0.0, %v532
        %534 = vmatmul.f32.gmra.mxu0 %v327
        %v535 = vpop.f32.mrf.mxu0
        %v536 = vadd.f32 0.0, %v535
        %537 = vmatmul.f32.gmra.mxu0 %v330
        %v538 = vpop.f32.mrf.mxu0
        %v539 = vadd.f32 0.0, %v538
        %540 = vmatmul.f32.gmra.mxu0 %v333
        %v541 = vpop.f32.mrf.mxu0
        %v542 = vadd.f32 0.0, %v541
        %543 = vmatmul.f32.gmra.mxu0 %v336
        %v544 = vpop.f32.mrf.mxu0
        %v545 = vadd.f32 0.0, %v544
        %546 = vmatmul.f32.gmra.mxu0 %v339
        %v547 = vpop.f32.mrf.mxu0
        %v548 = vadd.f32 0.0, %v547
        %549 = vmatmul.f32.gmra.mxu0 %v342
        %v550 = vpop.f32.mrf.mxu0
        %v551 = vadd.f32 0.0, %v550
        %552 = vmatmul.f32.gmra.mxu0 %v345
        %v553 = vpop.f32.mrf.mxu0
        %v554 = vadd.f32 0.0, %v553
        %555 = vmatmul.f32.gmra.mxu0 %v348
        %v556 = vpop.f32.mrf.mxu0
        %v557 = vadd.f32 0.0, %v556
        %558 = vmatmul.f32.gmra.mxu0 %v351
        %v559 = vpop.f32.mrf.mxu0
        %v560 = vadd.f32 0.0, %v559
        %561 = vdwg.mxu0
        %562 = vmatpush.xpose.msra.mxu0 %v447
        %563 = vmatpush.xpose.msra.mxu0 %v444
        %564 = vmatpush.xpose.msra.mxu0 %v441
        %565 = vmatpush.xpose.msra.mxu0 %v438
        %566 = vmatpush.xpose.msra.mxu0 %v435
        %567 = vmatpush.xpose.msra.mxu0 %v432
        %568 = vmatpush.xpose.msra.mxu0 %v429
        %569 = vmatpush.xpose.msra.mxu0 %v426
        %570 = vmatpush.xpose.msra.mxu0 %v423
        %571 = vmatpush.xpose.msra.mxu0 %v420
        %572 = vmatpush.xpose.msra.mxu0 %v417
        %573 = vmatpush.xpose.msra.mxu0 %v414
        %574 = vmatpush.xpose.msra.mxu0 %v411
        %575 = vmatpush.xpose.msra.mxu0 %v408
        %576 = vmatpush.xpose.msra.mxu0 %v405
        %577 = vmatpush.xpose.msra.mxu0 %v402
        %578 = vmatmul.f32.gmra.mxu0 %v258
        %v579 = vpop.f32.mrf.mxu0
        %v580 = vadd.f32 0.0, %v579
        %581 = vmatmul.f32.gmra.mxu0 %v261
        %v582 = vpop.f32.mrf.mxu0
        %v583 = vadd.f32 0.0, %v582
        %584 = vmatmul.f32.gmra.mxu0 %v264
        %v585 = vpop.f32.mrf.mxu0
        %v586 = vadd.f32 0.0, %v585
        %587 = vmatmul.f32.gmra.mxu0 %v267
        %v588 = vpop.f32.mrf.mxu0
        %v589 = vadd.f32 0.0, %v588
        %590 = vmatmul.f32.gmra.mxu0 %v270
        %v591 = vpop.f32.mrf.mxu0
        %v592 = vadd.f32 0.0, %v591
        %593 = vmatmul.f32.gmra.mxu0 %v273
        %v594 = vpop.f32.mrf.mxu0
        %v595 = vadd.f32 0.0, %v594
        %596 = vmatmul.f32.gmra.mxu0 %v276
        %v597 = vpop.f32.mrf.mxu0
        %v598 = vadd.f32 0.0, %v597
        %599 = vmatmul.f32.gmra.mxu0 %v279
        %v600 = vpop.f32.mrf.mxu0
        %v601 = vadd.f32 0.0, %v600
        %602 = vmatmul.f32.gmra.mxu0 %v282
        %v603 = vpop.f32.mrf.mxu0
        %v604 = vadd.f32 0.0, %v603
        %605 = vmatmul.f32.gmra.mxu0 %v285
        %v606 = vpop.f32.mrf.mxu0
        %v607 = vadd.f32 0.0, %v606
        %608 = vmatmul.f32.gmra.mxu0 %v288
        %v609 = vpop.f32.mrf.mxu0
        %v610 = vadd.f32 0.0, %v609
        %611 = vmatmul.f32.gmra.mxu0 %v291
        %v612 = vpop.f32.mrf.mxu0
        %v613 = vadd.f32 0.0, %v612
        %614 = vmatmul.f32.gmra.mxu0 %v294
        %v615 = vpop.f32.mrf.mxu0
        %v616 = vadd.f32 0.0, %v615
        %617 = vmatmul.f32.gmra.mxu0 %v297
        %v618 = vpop.f32.mrf.mxu0
        %v619 = vadd.f32 0.0, %v618
        %620 = vmatmul.f32.gmra.mxu0 %v300
        %v621 = vpop.f32.mrf.mxu0
        %v622 = vadd.f32 0.0, %v621
        %623 = vmatmul.f32.gmra.mxu0 %v303
        %v624 = vpop.f32.mrf.mxu0
        %v625 = vadd.f32 0.0, %v624
        %626 = vmatmul.f32.gmra.mxu0 %v306
        %v627 = vpop.f32.mrf.mxu0
        %v628 = vadd.f32 0.0, %v627
        %629 = vmatmul.f32.gmra.mxu0 %v309
        %v630 = vpop.f32.mrf.mxu0
        %v631 = vadd.f32 0.0, %v630
        %632 = vmatmul.f32.gmra.mxu0 %v312
        %v633 = vpop.f32.mrf.mxu0
        %v634 = vadd.f32 0.0, %v633
        %635 = vmatmul.f32.gmra.mxu0 %v315
        %v636 = vpop.f32.mrf.mxu0
        %v637 = vadd.f32 0.0, %v636
        %638 = vmatmul.f32.gmra.mxu0 %v318
        %v639 = vpop.f32.mrf.mxu0
        %v640 = vadd.f32 0.0, %v639
        %641 = vmatmul.f32.gmra.mxu0 %v321
        %v642 = vpop.f32.mrf.mxu0
        %v643 = vadd.f32 0.0, %v642
        %644 = vmatmul.f32.gmra.mxu0 %v324
        %v645 = vpop.f32.mrf.mxu0
        %v646 = vadd.f32 0.0, %v645
        %647 = vmatmul.f32.gmra.mxu0 %v327
        %v648 = vpop.f32.mrf.mxu0
        %v649 = vadd.f32 0.0, %v648
        %650 = vmatmul.f32.gmra.mxu0 %v330
        %v651 = vpop.f32.mrf.mxu0
        %v652 = vadd.f32 0.0, %v651
        %653 = vmatmul.f32.gmra.mxu0 %v333
        %v654 = vpop.f32.mrf.mxu0
        %v655 = vadd.f32 0.0, %v654
        %656 = vmatmul.f32.gmra.mxu0 %v336
        %v657 = vpop.f32.mrf.mxu0
        %v658 = vadd.f32 0.0, %v657
        %659 = vmatmul.f32.gmra.mxu0 %v339
        %v660 = vpop.f32.mrf.mxu0
        %v661 = vadd.f32 0.0, %v660
        %662 = vmatmul.f32.gmra.mxu0 %v342
        %v663 = vpop.f32.mrf.mxu0
        %v664 = vadd.f32 0.0, %v663
        %665 = vmatmul.f32.gmra.mxu0 %v345
        %v666 = vpop.f32.mrf.mxu0
        %v667 = vadd.f32 0.0, %v666
        %668 = vmatmul.f32.gmra.mxu0 %v348
        %v669 = vpop.f32.mrf.mxu0
        %v670 = vadd.f32 0.0, %v669
        %671 = vmatmul.f32.gmra.mxu0 %v351
        %v672 = vpop.f32.mrf.mxu0
        %v673 = vadd.f32 0.0, %v672
        %674 = vdwg.mxu0
        %v675 = vmul.f32 %v467, %v467
        %v676 = vmul.f32 %v580, %v580
        %v677 = vmul.f32 %v470, %v470
        %v678 = vmul.f32 %v583, %v583
        %v679 = vmul.f32 %v473, %v473
        %v680 = vmul.f32 %v586, %v586
        %v681 = vmul.f32 %v476, %v476
        %v682 = vmul.f32 %v589, %v589
        %v683 = vmul.f32 %v479, %v479
        %v684 = vmul.f32 %v592, %v592
        %v685 = vmul.f32 %v482, %v482
        %v686 = vmul.f32 %v595, %v595
        %v687 = vmul.f32 %v485, %v485
        %v688 = vmul.f32 %v598, %v598
        %v689 = vmul.f32 %v488, %v488
        %v690 = vmul.f32 %v601, %v601
        %v691 = vmul.f32 %v491, %v491
        %v692 = vmul.f32 %v604, %v604
        %v693 = vmul.f32 %v494, %v494
        %v694 = vmul.f32 %v607, %v607
        %v695 = vmul.f32 %v497, %v497
        %v696 = vmul.f32 %v610, %v610
        %v697 = vmul.f32 %v500, %v500
        %v698 = vmul.f32 %v613, %v613
        %v699 = vmul.f32 %v503, %v503
        %v700 = vmul.f32 %v616, %v616
        %v701 = vmul.f32 %v506, %v506
        %v702 = vmul.f32 %v619, %v619
        %v703 = vmul.f32 %v509, %v509
        %v704 = vmul.f32 %v622, %v622
        %v705 = vmul.f32 %v512, %v512
        %v706 = vmul.f32 %v625, %v625
        %v707 = vmul.f32 %v515, %v515
        %v708 = vmul.f32 %v628, %v628
        %v709 = vmul.f32 %v518, %v518
        %v710 = vmul.f32 %v631, %v631
        %v711 = vmul.f32 %v521, %v521
        %v712 = vmul.f32 %v634, %v634
        %v713 = vmul.f32 %v524, %v524
        %v714 = vmul.f32 %v637, %v637
        %v715 = vmul.f32 %v527, %v527
        %v716 = vmul.f32 %v640, %v640
        %v717 = vmul.f32 %v530, %v530
        %v718 = vmul.f32 %v643, %v643
        %v719 = vmul.f32 %v533, %v533
        %v720 = vmul.f32 %v646, %v646
        %v721 = vmul.f32 %v536, %v536
        %v722 = vmul.f32 %v649, %v649
        %v723 = vmul.f32 %v539, %v539
        %v724 = vmul.f32 %v652, %v652
        %v725 = vmul.f32 %v542, %v542
        %v726 = vmul.f32 %v655, %v655
        %v727 = vmul.f32 %v545, %v545
        %v728 = vmul.f32 %v658, %v658
        %v729 = vmul.f32 %v548, %v548
        %v730 = vmul.f32 %v661, %v661
        %v731 = vmul.f32 %v551, %v551
        %v732 = vmul.f32 %v664, %v664
        %v733 = vmul.f32 %v554, %v554
        %v734 = vmul.f32 %v667, %v667
        %v735 = vmul.f32 %v557, %v557
        %v736 = vmul.f32 %v670, %v670
        %v737 = vmul.f32 %v560, %v560
        %v738 = vmul.f32 %v673, %v673
        %v739 = vadd.f32 %v675, %v677
        %v740 = vadd.f32 %v739, %v679
        %v741 = vadd.f32 %v740, %v681
        %v742 = vadd.f32 %v741, %v683
        %v743 = vadd.f32 %v742, %v685
        %v744 = vadd.f32 %v743, %v687
        %v745 = vadd.f32 %v744, %v689
        %v746 = vadd.f32 %v745, %v691
        %v747 = vadd.f32 %v746, %v693
        %v748 = vadd.f32 %v747, %v695
        %v749 = vadd.f32 %v748, %v697
        %v750 = vadd.f32 %v749, %v699
        %v751 = vadd.f32 %v750, %v701
        %v752 = vadd.f32 %v751, %v703
        %v753 = vadd.f32 %v752, %v705
        %v754 = vadd.f32 %v753, %v707
        %v755 = vadd.f32 %v754, %v709
        %v756 = vadd.f32 %v755, %v711
        %v757 = vadd.f32 %v756, %v713
        %v758 = vadd.f32 %v757, %v715
        %v759 = vadd.f32 %v758, %v717
        %v760 = vadd.f32 %v759, %v719
        %v761 = vadd.f32 %v760, %v721
        %v762 = vadd.f32 %v761, %v723
        %v763 = vadd.f32 %v762, %v725
        %v764 = vadd.f32 %v763, %v727
        %v765 = vadd.f32 %v764, %v729
        %v766 = vadd.f32 %v765, %v731
        %v767 = vadd.f32 %v766, %v733
        %v768 = vadd.f32 %v767, %v735
        %v769 = vadd.f32 %v768, %v737
        %v770 = vrot.slane %v769, 4
        %v771 = vadd.f32 %v769, %v770
        %v772 = vrot.slane %v771, 2
        %v773 = vadd.f32 %v771, %v772
        %v774 = vrot.slane %v773, 1
        %v775 = vadd.f32 %v773, %v774
        %v776 = vadd.f32 %v676, %v678
        %v777 = vadd.f32 %v776, %v680
        %v778 = vadd.f32 %v777, %v682
        %v779 = vadd.f32 %v778, %v684
        %v780 = vadd.f32 %v779, %v686
        %v781 = vadd.f32 %v780, %v688
        %v782 = vadd.f32 %v781, %v690
        %v783 = vadd.f32 %v782, %v692
        %v784 = vadd.f32 %v783, %v694
        %v785 = vadd.f32 %v784, %v696
        %v786 = vadd.f32 %v785, %v698
        %v787 = vadd.f32 %v786, %v700
        %v788 = vadd.f32 %v787, %v702
        %v789 = vadd.f32 %v788, %v704
        %v790 = vadd.f32 %v789, %v706
        %v791 = vadd.f32 %v790, %v708
        %v792 = vadd.f32 %v791, %v710
        %v793 = vadd.f32 %v792, %v712
        %v794 = vadd.f32 %v793, %v714
        %v795 = vadd.f32 %v794, %v716
        %v796 = vadd.f32 %v795, %v718
        %v797 = vadd.f32 %v796, %v720
        %v798 = vadd.f32 %v797, %v722
        %v799 = vadd.f32 %v798, %v724
        %v800 = vadd.f32 %v799, %v726
        %v801 = vadd.f32 %v800, %v728
        %v802 = vadd.f32 %v801, %v730
        %v803 = vadd.f32 %v802, %v732
        %v804 = vadd.f32 %v803, %v734
        %v805 = vadd.f32 %v804, %v736
        %v806 = vadd.f32 %v805, %v738
        %v807 = vrot.slane %v806, 4
        %v808 = vadd.f32 %v806, %v807
        %v809 = vrot.slane %v808, 2
        %v810 = vadd.f32 %v808, %v809
        %v811 = vrot.slane %v810, 1
        %v812 = vadd.f32 %v810, %v811
        %v815 = vrot.slane %v812, 7
        %vm816 = vcmask 1040384
        %v817 = vsel %vm816, %v775, %v815
        %v819 = vlaneseq
        %vm820 = vcmp.ge.s32.totalorder %v819, 0
        %vm821 = vcmp.lt.s32.totalorder %v819, 256
        %vm822 = vmand %vm820, %vm821
        %823 = vst.msk [vmem:[%s176] sm:$0x3] %vm822, %v817
        %s824 = sand.u32 %s92, 1
        %s825 = scalar_lea.sflag [#allocation3], %s824
        %s826 = sand.u32 %s92, 1
        %s827 = smul.addr %s826, 2
        %s828 = scalar_lea.vmem [#allocation2], %s827
        // Predicated region
        $region29: #{tpu_custom_call.1} parent=27 // pred_check
          %p829 = pneg %p102
        $region30: #{tpu_custom_call.1} parent=27 // pred_check_branch
          %831 = sbr.rel (%p829) target = $region32
        $region31: #{tpu_custom_call.1} parent=27 // pred_region
          %833 = vsyncadd %s825, 0
          %s834 = smul.addr %s21, 2
          %s835 = smul.addr %s20, 2
          %s836 = sadd.s32 %s834, %s835
          %s837 = scalar_lea.hbm %s2, %s836
          %s839 = sshll.u32 %s828, 4
          %s840 = int_to_ptr.vmem [resolvable:$true] %s839
          %s841 = sshll.u32 %s837, 4
          %s842 = int_to_ptr.hbm [resolvable:$true] %s841
          %844 = dma.vmem_to_hbm [thread:$0]  %s840, 32, %s842, %s825
        $region32: #{tpu_custom_call.1} parent=27 // pred_fallthru
          _
      $region28: #{tpu_custom_call.1} parent=5 // pred_fallthru
        _
      %p845 = scmp.le.s32.totalorder 2, %s11
      // Predicated region
      $region33: #{tpu_custom_call.1} parent=5 // pred_check
        %p846 = pneg %p845
      $region34: #{tpu_custom_call.1} parent=5 // pred_check_branch
        %848 = sbr.rel (%p846) target = $region36
      $region35: #{tpu_custom_call.1} parent=5 // pred_region
        %s849 = ssub.s32 %s11, 2
        // Predicated region
        $region37: #{tpu_custom_call.1} parent=35 // pred_check
          %p850 = pneg %p108
        $region38: #{tpu_custom_call.1} parent=35 // pred_check_branch
          %852 = sbr.rel (%p850) target = $region40
        $region39: #{tpu_custom_call.1} parent=35 // pred_region
          %s853 = sand.u32 %s93, 1
          %s854 = scalar_lea.sflag [#allocation3], %s853
          %s855 = sand.u32 %s93, 1
          %s856 = smul.addr %s855, 2
          %s857 = scalar_lea.vmem [#allocation2], %s856
          %859 = dma.done %s854, 32
        $region40: #{tpu_custom_call.1} parent=35 // pred_fallthru
          _
      $region36: #{tpu_custom_call.1} parent=5 // pred_fallthru
        _
    $region6: #{tpu_custom_call.1} parent=1 // loop_footer
      %s15 = sadd.s32 1, %s11
    $region7: #{tpu_custom_call.1} parent=1 // loop_footer_branch
      %10 = sbr.rel target = $region3
    $region8: #{tpu_custom_call.1} parent=1 // loop_exit
      _
    %860 = vsyncpa [#allocation3], 1
    %s861 = scalar_lea.sflag [#allocation3], 1
    %862 = vsyncpa %s861, 1

</llo_original>
